<compile_context>
chip_gen: v5e
topology: v5e:2x2
jax: 0.10.0
libtpu: 0.0.40
codegen_flags: <defaults>
</compile_context>

<pallas_src>
import functools

import jax
import jax.numpy as jnp
from jax.experimental import pallas as pl
from jax.experimental.pallas import tpu as pltpu

IMG_HW = 64  # reduced from 224 for a fast, small demo


# ----------------------------------------------------------------------------
# Pallas kernels
# ----------------------------------------------------------------------------
def _mm_kernel(*refs, relu, has_res):
    """o = a @ b + shift [+ residual] [ReLU].  bf16 operands, f32 accumulate/epilogue."""
    if has_res:
        a_ref, b_ref, t_ref, r_ref, o_ref = refs
    else:
        a_ref, b_ref, t_ref, o_ref = refs
        r_ref = None
    y = jnp.dot(a_ref[...], b_ref[...], preferred_element_type=jnp.float32)
    y = y + t_ref[...]
    if has_res:
        y = y + r_ref[...]
    if relu:
        y = jnp.maximum(y, 0.0)
    o_ref[...] = y.astype(o_ref.dtype)


def matmul_bias(a_bf16, w_bf16, shift, residual=None, relu=False):
    """Single-shot fused matmul.

    a:[M,K] bf16 (im2col slab), w:[K,N] bf16 (BN scale already folded in),
    shift:[N] f32, residual:[M,N] f32 (optional).  Output f32 [M,N].

    Blocks are full-extent in K and N (no 128-padding); only M is split in two
    (when it divides cleanly) so the grid has >=2 'parallel' blocks for v7x's
    two TensorCores.  No K grid -> no accumulator scratch.
    """
    M, K = a_bf16.shape
    K2, N = w_bf16.shape
    assert K == K2
    sm = 2 if (M >= 256 and M % 32 == 0) else 1
    tm = M // sm
    t2d = shift.reshape(1, N).astype(jnp.float32)

    in_specs = [
        pl.BlockSpec((tm, K), lambda i: (i, 0)),
        pl.BlockSpec((K, N), lambda i: (0, 0)),
        pl.BlockSpec((1, N), lambda i: (0, 0)),
    ]
    args = [a_bf16, w_bf16, t2d]
    has_res = residual is not None
    if has_res:
        in_specs.append(pl.BlockSpec((tm, N), lambda i: (i, 0)))
        args.append(residual.astype(jnp.float32))

    return pl.pallas_call(
        functools.partial(_mm_kernel, relu=relu, has_res=has_res),
        out_shape=jax.ShapeDtypeStruct((M, N), jnp.float32),
        grid=(sm,),
        in_specs=in_specs,
        out_specs=pl.BlockSpec((tm, N), lambda i: (i, 0)),
        compiler_params=pltpu.CompilerParams(
            dimension_semantics=("parallel",)),
    )(*args)


def _maxpool_kernel(m00_ref, m01_ref, m10_ref, m11_ref, o_ref):
    """3x3 / stride-2 / pad-1 max pool from the four parity planes.

    m_pq[a, b, c] = x_padded[2a+p, 2b+q, c]  (each [Ho+1, Wo+1, C]).
    window(ho, wo) = max over H in {2ho,2ho+1,2ho+2}, W in {2wo,2wo+1,2wo+2}:
      = max( max(m00,m01,m10,m11)[ho,wo], max(m00,m10)[ho,wo+1],
             max(m00,m01)[ho+1,wo],       m00[ho+1,wo+1] )
    """
    m00 = m00_ref[...]
    m01 = m01_ref[...]
    m10 = m10_ref[...]
    m11 = m11_ref[...]
    Ho, Wo, _ = o_ref.shape
    full = jnp.maximum(jnp.maximum(m00, m01), jnp.maximum(m10, m11))
    col0 = jnp.maximum(m00, m10)   # W-even taps
    row0 = jnp.maximum(m00, m01)   # H-even taps
    o_ref[...] = jnp.maximum(
        jnp.maximum(full[:Ho, :Wo, :], col0[:Ho, 1:Wo + 1, :]),
        jnp.maximum(row0[1:Ho + 1, :Wo, :], m00[1:Ho + 1, 1:Wo + 1, :]))


def maxpool_3x3_s2_p1(x):
    """x: [1,H,W,C] -> [1,H//2,W//2,C] (ResNet stem maxpool)."""
    N, H, W, C = x.shape
    assert N == 1 and H % 2 == 0 and W % 2 == 0
    Ho, Wo = H // 2, W // 2
    xp = jnp.pad(x, ((0, 0), (1, 1), (1, 1), (0, 0)), constant_values=-jnp.inf)
    # Four parity planes (one copy of the tensor total, vs. 9x for stacked views).
    planes = [xp[0, p::2, q::2, :] for p in (0, 1) for q in (0, 1)]
    out = pl.pallas_call(
        _maxpool_kernel,
        out_shape=jax.ShapeDtypeStruct((Ho, Wo, C), x.dtype),
    )(*planes)
    return out.reshape(N, Ho, Wo, C)


def _head_kernel(x_ref, w1_ref, b1_ref, w2_ref, b2_ref, w3_ref, b3_ref, o_ref):
    """Fused linear head: global average + three 1x1 convs (as [1,K]@[K,N] matmuls)."""
    xm = jnp.mean(x_ref[...], axis=0, keepdims=True)                   # [1, C] f32
    h = jnp.dot(xm.astype(jnp.bfloat16), w1_ref[...],
                preferred_element_type=jnp.float32) + b1_ref[...]
    h = jnp.dot(h.astype(jnp.bfloat16), w2_ref[...],
                preferred_element_type=jnp.float32) + b2_ref[...]
    o_ref[...] = jnp.dot(h.astype(jnp.bfloat16), w3_ref[...],
                         preferred_element_type=jnp.float32) + b3_ref[...]


def head_pool_mlp(x2d, w1, b1, w2, b2, w3, b3):
    """Exact replacement for conv1x1+avgpool x3 + adaptive_avg_pool (all linear)."""
    HW, C = x2d.shape
    C1, C2, C3 = w1.shape[1], w2.shape[1], w3.shape[1]
    sn = 2 if C3 % 256 == 0 else 1      # 2 parallel blocks over the 2048-wide output
    tn = C3 // sn
    return pl.pallas_call(
        _head_kernel,
        out_shape=jax.ShapeDtypeStruct((1, C3), jnp.float32),
        grid=(sn,),
        in_specs=[
            pl.BlockSpec((HW, C), lambda j: (0, 0)),
            pl.BlockSpec((C, C1), lambda j: (0, 0)),
            pl.BlockSpec((1, C1), lambda j: (0, 0)),
            pl.BlockSpec((C1, C2), lambda j: (0, 0)),
            pl.BlockSpec((1, C2), lambda j: (0, 0)),
            pl.BlockSpec((C2, tn), lambda j: (0, j)),
            pl.BlockSpec((1, tn), lambda j: (0, j)),
        ],
        out_specs=pl.BlockSpec((1, tn), lambda j: (0, j)),
        compiler_params=pltpu.CompilerParams(
            dimension_semantics=("parallel",)),
    )(x2d.astype(jnp.float32),
      w1.astype(jnp.bfloat16), b1.reshape(1, C1).astype(jnp.float32),
      w2.astype(jnp.bfloat16), b2.reshape(1, C2).astype(jnp.float32),
      w3.astype(jnp.bfloat16), b3.reshape(1, C3).astype(jnp.float32))


# ----------------------------------------------------------------------------
# Glue: BN folding, im2col conv wrapper
# ----------------------------------------------------------------------------
def bn_affine(gamma, beta, mean, var, eps=1e-5):
    scale = gamma / jnp.sqrt(var + eps)
    shift = beta - mean * scale
    return scale, shift


def conv2d(x, w, scale, shift, relu, stride=1, pad=0, residual=None):
    """x: [N,H,W,Cin] NHWC f32; w: [kh,kw,Cin,Cout].
    Computed as  im2col(x)_bf16 @ (w * scale)_bf16  + shift [+ residual] [ReLU]."""
    N, H, W, Cin = x.shape
    kh, kw, _, Cout = w.shape
    Ho = (H + 2 * pad - kh) // stride + 1
    Wo = (W + 2 * pad - kw) // stride + 1
    xb = x.astype(jnp.bfloat16)
    if kh == 1 and kw == 1 and stride == 1 and pad == 0:
        cols = xb.reshape(N * H * W, Cin)
    else:
        # TODO(synk): im2col taps are still gathered XLA-side; an in-kernel tap
        # grid axis / manual DMA gather would remove this extra HBM slab.
        xpd = jnp.pad(xb, ((0, 0), (pad, pad), (pad, pad), (0, 0)))
        taps = [xpd[:, i:i + stride * Ho:stride, j:j + stride * Wo:stride, :]
                for i in range(kh) for j in range(kw)]
        cols = jnp.stack(taps, axis=3).reshape(N * Ho * Wo, kh * kw * Cin)
    w_eff = (w.reshape(kh * kw * Cin, Cout) * scale[None, :]).astype(jnp.bfloat16)
    y = matmul_bias(cols, w_eff, shift, residual=residual, relu=relu)
    return y.reshape(N, Ho, Wo, Cout)


# ----------------------------------------------------------------------------
# Deterministic parameter init (shapes follow resnet50 conv1/bn1/layer1 + cnn head)
# ----------------------------------------------------------------------------
def init_params(key):
    keys = iter(jax.random.split(key, 256))

    def nk():
        return next(keys)

    def conv_w(kh, kw, cin, cout):
        fan_in = kh * kw * cin
        return jax.random.normal(nk(), (kh, kw, cin, cout),
                                 jnp.float32) / jnp.sqrt(float(fan_in))

    def bn(c):
        return dict(
            gamma=jax.random.uniform(nk(), (c,), jnp.float32, 0.5, 1.5),
            beta=jax.random.normal(nk(), (c,), jnp.float32) * 0.1,
            mean=jax.random.normal(nk(), (c,), jnp.float32) * 0.1,
            var=jax.random.uniform(nk(), (c,), jnp.float32, 0.5, 1.5),
        )

    p = {}
    p["conv1_w"] = conv_w(7, 7, 3, 64)      # Conv2d(3,64,7,stride=2,pad=3,bias=False)
    p["bn1"] = bn(64)

    # layer1: 3 Bottleneck blocks (64 -> 256, stride 1, first has downsample)
    blocks = []
    in_c = 64
    for b in range(3):
        blk = dict(
            conv1_w=conv_w(1, 1, in_c, 64), bn1=bn(64),
            conv2_w=conv_w(3, 3, 64, 64),   bn2=bn(64),
            conv3_w=conv_w(1, 1, 64, 256),  bn3=bn(256),
        )
        if b == 0:
            blk["down_w"] = conv_w(1, 1, in_c, 256)
            blk["down_bn"] = bn(256)
        blocks.append(blk)
        in_c = 256
    p["layer1"] = blocks

    # custom cnn head: Conv2d(256,512,1)+AvgPool, Conv2d(512,1024,1)+AvgPool,
    #                  Conv2d(1024,2048,1)+AvgPool   (these convs have bias)
    p["cnn1_w"] = conv_w(1, 1, 256, 512)
    p["cnn1_b"] = jax.random.normal(nk(), (512,), jnp.float32) * 0.01
    p["cnn2_w"] = conv_w(1, 1, 512, 1024)
    p["cnn2_b"] = jax.random.normal(nk(), (1024,), jnp.float32) * 0.01
    p["cnn3_w"] = conv_w(1, 1, 1024, 2048)
    p["cnn3_b"] = jax.random.normal(nk(), (2048,), jnp.float32) * 0.01
    return p


# ----------------------------------------------------------------------------
# Forward pass (mirrors ImageFeatureExtractor1.forward)
# ----------------------------------------------------------------------------
def bottleneck(x, blk):
    N, H, W, Cin = x.shape
    x2d = x.reshape(N * H * W, Cin)

    s1, t1 = bn_affine(**blk["bn1"])
    out = conv2d(x, blk["conv1_w"], s1, t1, relu=True)
    s2, t2 = bn_affine(**blk["bn2"])
    out = conv2d(out, blk["conv2_w"], s2, t2, relu=True, stride=1, pad=1)

    if "down_w" in blk:
        ds, dt = bn_affine(**blk["down_bn"])
        identity2d = conv2d(x, blk["down_w"], ds, dt, relu=False).reshape(N * H * W, -1)
    else:
        identity2d = x2d

    # conv3 with the residual add + ReLU fused into the matmul epilogue
    s3, t3 = bn_affine(**blk["bn3"])
    out = conv2d(out, blk["conv3_w"], s3, t3, relu=True, residual=identity2d)
    return out


def image_feature_extractor(img, params):
    # tmpimg = img.reshape([1, 3, H, W])  (NCHW)  ->  NHWC for the kernels
    H = W = IMG_HW
    x = img.reshape(1, 3, H, W).transpose(0, 2, 3, 1).astype(jnp.float32)

    # resnet50 stem: conv1 -> bn1 -> relu -> maxpool
    s, t = bn_affine(**params["bn1"])
    x = conv2d(x, params["conv1_w"], s, t, relu=True, stride=2, pad=3)
    x = maxpool_3x3_s2_p1(x)

    # resnet50 layer1 (3 bottleneck blocks)
    for blk in params["layer1"]:
        x = bottleneck(x, blk)

    # Custom head: Conv1x1+AvgPool x3 + adaptive_avg_pool.  Everything is linear,
    # so the pools commute with the 1x1 convs and compose into a single global
    # average:   feat = ((mean_HW(x) @ W1 + b1) @ W2 + b2) @ W3 + b3   (exact).
    N, Hh, Ww, C = x.shape
    feat = head_pool_mlp(
        x.reshape(N * Hh * Ww, C),
        params["cnn1_w"].reshape(C, -1), params["cnn1_b"],
        params["cnn2_w"].reshape(512, -1), params["cnn2_b"],
        params["cnn3_w"].reshape(1024, -1), params["cnn3_b"])
    return feat.reshape(1, 2048)


if __name__ == "__main__":
    key = jax.random.PRNGKey(0)
    k_img, k_par = jax.random.split(key)
    img = jax.random.normal(k_img, (3, IMG_HW, IMG_HW), jnp.float32)
    params = init_params(k_par)

    feat = image_feature_extractor(img, params)
    feat = jax.block_until_ready(feat)

    assert feat.shape == (1, 2048), feat.shape
    assert feat.dtype == jnp.float32
    assert bool(jnp.all(jnp.isfinite(feat)))
    print("KERNEL_OK")
</pallas_src>

<mosaic_0001>
module attributes {stable_mosaic.version = 11 : i64} {
  func.func @_mm_kernel(%arg0: i32, %arg1: memref<512x147xbf16, #tpu.memory_space<vmem>>, %arg2: memref<147x64xbf16, #tpu.memory_space<vmem>>, %arg3: memref<1x64xf32, #tpu.memory_space<vmem>>, %arg4: memref<512x64xf32, #tpu.memory_space<vmem>>) attributes {dimension_semantics = [#tpu.dimension_semantics<parallel>], iteration_bounds = array<i64: 2>, scalar_prefetch = 0 : i64, scratch_operands = 0 : i64, tpu.core_type = #tpu.core_type<tc>, window_params = [{transform_indices = @transform_0, window_bounds = array<i64: 512, 147>}, {pipeline_mode = #tpu.pipeline_mode<synchronous>, transform_indices = @transform_1, window_bounds = array<i64: 147, 64>}, {pipeline_mode = #tpu.pipeline_mode<synchronous>, transform_indices = @transform_2, window_bounds = array<i64: 1, 64>}, {transform_indices = @transform_3, window_bounds = array<i64: 512, 64>}]} {
    %c0 = arith.constant 0 : index
    %c0_0 = arith.constant 0 : index
    %0 = vector.load %arg1[%c0, %c0_0] : memref<512x147xbf16, #tpu.memory_space<vmem>>, vector<512x147xbf16>
    %c0_1 = arith.constant 0 : index
    %c0_2 = arith.constant 0 : index
    %1 = vector.load %arg2[%c0_1, %c0_2] : memref<147x64xbf16, #tpu.memory_space<vmem>>, vector<147x64xbf16>
    %cst = arith.constant dense<0.000000e+00> : vector<512x64xf32>
    %2 = tpu.matmul %0, %1, %cst {dimension_numbers = #tpu.dot_dimension_numbers<[1], [0], [0], [1], [0, 0, 1, 1], [], []>} : vector<512x147xbf16>, vector<147x64xbf16>, vector<512x64xf32> -> vector<512x64xf32>
    %c0_3 = arith.constant 0 : index
    %c0_4 = arith.constant 0 : index
    %3 = vector.load %arg3[%c0_3, %c0_4] : memref<1x64xf32, #tpu.memory_space<vmem>>, vector<1x64xf32>
    %4 = vector.broadcast %3 : vector<1x64xf32> to vector<512x64xf32>
    %5 = arith.addf %2, %4 : vector<512x64xf32>
    %cst_5 = arith.constant 0.000000e+00 : f32
    %6 = vector.broadcast %cst_5 : f32 to vector<512x64xf32>
    %7 = arith.maximumf %5, %6 : vector<512x64xf32>
    %c0_6 = arith.constant 0 : index
    %c0_7 = arith.constant 0 : index
    %8 = vector.load %arg4[%c0_6, %c0_7] : memref<512x64xf32, #tpu.memory_space<vmem>>, vector<512x64xf32>
    tpu.vector_store %arg4[%c0_6, %c0_7], %7 {strides = array<i32>} : memref<512x64xf32, #tpu.memory_space<vmem>>, vector<512x64xf32>,
    return
  }
  func.func @transform_0(%arg0: i32) -> (i32, i32) {
    %c0_i32 = arith.constant 0 : i32
    %c0_i32_0 = arith.constant 0 : i32
    return %arg0, %c0_i32 : i32, i32
  }
  func.func @transform_1(%arg0: i32) -> (i32, i32) {
    %c0_i32 = arith.constant 0 : i32
    %c0_i32_0 = arith.constant 0 : i32
    %c0_i32_1 = arith.constant 0 : i32
    return %c0_i32, %c0_i32_0 : i32, i32
  }
  func.func @transform_2(%arg0: i32) -> (i32, i32) {
    %c0_i32 = arith.constant 0 : i32
    %c0_i32_0 = arith.constant 0 : i32
    %c0_i32_1 = arith.constant 0 : i32
    return %c0_i32, %c0_i32_0 : i32, i32
  }
  func.func @transform_3(%arg0: i32) -> (i32, i32) {
    %c0_i32 = arith.constant 0 : i32
    %c0_i32_0 = arith.constant 0 : i32
    return %arg0, %c0_i32 : i32, i32
  }
}

</mosaic_0001>

<llo_original>
// kernel: tpu_custom_call.1
$region0: #{tpu_custom_call.1}
  #allocation0 [shape = 'u32[]', space=smem, size = 0x4, offset = 0x4, fixed_abs, tag = 'smem constant byte address 0x4 - core index']
  #allocation1 [shape = 'u32[72,128]{1,0:T(1,128)}', space=vmem, size = 0x9000, scoped, tag = 'internal scratch']
  %s0 = inlined_call_operand.vmem [shape: bf16[1024,147], index: 0, kind: input, shape index: {}]
  %s1 = inlined_call_operand.vmem [shape: bf16[147,64], index: 1, kind: input, shape index: {}]
  %s2 = inlined_call_operand.vmem [shape: f32[1,64], index: 2, kind: input, shape index: {}]
  %s3 = inlined_call_operand.vmem [shape: f32[1024,64], index: 3, kind: output, shape index: {}]
  %s4 = sld [smem:[#allocation0]]
  $region45: #{tpu_custom_call.1} parent=0
    _
  %s6 = ssub.s32 1, %s4
  %s7 = scalar_select 0, %s6, %s4
  loop: start=0, step=1, limit=4
  $region2: #{tpu_custom_call.1} parent=0 // loop_pre_header
    _
  $region3: #{tpu_custom_call.1} parent=0 // loop_header
    %s9 = sphi 0, %s13
    %p10 = scmp.ge.s32.totalorder %s9, 4
    %s19 = sphi 0, %s21
    %s22 = sphi 0, %s19
    %s23 = sphi 0, %s22
    %s39 = sphi 0, %s23
    %s43 = sphi 0, %s43
    %s45 = sphi 0, %s43
    %s46 = sphi 0, %s45
    %s60 = sphi 0, %s46
    %s64 = sphi 0, %s64
    %s66 = sphi 0, %s64
    %s67 = sphi 0, %s66
    %s81 = sphi 0, %s67
    %s87 = sphi 0, %s89
    %s90 = sphi 0, %s87
    %s91 = sphi 0, %s90
    %s107 = sphi 0, %s91
  $region4: #{tpu_custom_call.1} parent=0 // loop_header_branch
    %12 = sbr.rel (%p10) target = $region8
  $region5: #{tpu_custom_call.1} parent=0 // loop_body
    %s14 = ssub.s32 %s9, 1
    %s15 = ssub.s32 %s9, 2
    %s16 = sadd.s32 %s9, 1
    %s17 = ssub.s32 %s9, %s16
    %p18 = scmp.eq.s32.totalorder %s17, 0
    %s20 = sadd.s32 %s19, 1
    %s21 = scalar_select %p18, %s19, %s20
    %p24 = pneg %p18
    %p25 = scmp.eq.s32.totalorder %s9, 1
    %p26 = por %p24, %p25
    %p27 = scmp.ne.s32.totalorder %s19, %s22
    %p28 = scmp.eq.s32.totalorder %s9, 0
    %p29 = por %p27, %p28
    %p30 = scmp.ne.s32.totalorder %s19, %s22
    %p31 = scmp.eq.s32.totalorder %s14, 1
    %p32 = por %p30, %p31
    %p33 = scmp.ne.s32.totalorder %s22, %s23
    %p34 = scmp.eq.s32.totalorder %s14, 0
    %p35 = por %p33, %p34
    %p36 = scmp.ne.s32.totalorder %s22, %s23
    %p37 = scmp.eq.s32.totalorder %s15, 1
    %p38 = por %p36, %p37
    %p40 = scmp.ne.s32.totalorder %s23, %s39
    %p41 = scmp.eq.s32.totalorder %s15, 0
    %p42 = por %p40, %p41
    %s44 = sadd.s32 %s43, 1
    %p47 = scmp.eq.s32.totalorder %s9, 1
    %p48 = scmp.ne.s32.totalorder %s43, %s45
    %p49 = scmp.eq.s32.totalorder %s9, 0
    %p50 = por %p48, %p49
    %p51 = scmp.ne.s32.totalorder %s43, %s45
    %p52 = scmp.eq.s32.totalorder %s14, 1
    %p53 = por %p51, %p52
    %p54 = scmp.ne.s32.totalorder %s45, %s46
    %p55 = scmp.eq.s32.totalorder %s14, 0
    %p56 = por %p54, %p55
    %p57 = scmp.ne.s32.totalorder %s45, %s46
    %p58 = scmp.eq.s32.totalorder %s15, 1
    %p59 = por %p57, %p58
    %p61 = scmp.ne.s32.totalorder %s46, %s60
    %p62 = scmp.eq.s32.totalorder %s15, 0
    %p63 = por %p61, %p62
    %s65 = sadd.s32 %s64, 1
    %p68 = scmp.eq.s32.totalorder %s9, 1
    %p69 = scmp.ne.s32.totalorder %s64, %s66
    %p70 = scmp.eq.s32.totalorder %s9, 0
    %p71 = por %p69, %p70
    %p72 = scmp.ne.s32.totalorder %s64, %s66
    %p73 = scmp.eq.s32.totalorder %s14, 1
    %p74 = por %p72, %p73
    %p75 = scmp.ne.s32.totalorder %s66, %s67
    %p76 = scmp.eq.s32.totalorder %s14, 0
    %p77 = por %p75, %p76
    %p78 = scmp.ne.s32.totalorder %s66, %s67
    %p79 = scmp.eq.s32.totalorder %s15, 1
    %p80 = por %p78, %p79
    %p82 = scmp.ne.s32.totalorder %s67, %s81
    %p83 = scmp.eq.s32.totalorder %s15, 0
    %p84 = por %p82, %p83
    %s85 = ssub.s32 %s9, %s16
    %p86 = scmp.eq.s32.totalorder %s85, 0
    %s88 = sadd.s32 %s87, 1
    %s89 = scalar_select %p86, %s87, %s88
    %p92 = pneg %p86
    %p93 = scmp.eq.s32.totalorder %s9, 1
    %p94 = por %p92, %p93
    %p95 = scmp.ne.s32.totalorder %s87, %s90
    %p96 = scmp.eq.s32.totalorder %s9, 0
    %p97 = por %p95, %p96
    %p98 = scmp.ne.s32.totalorder %s87, %s90
    %p99 = scmp.eq.s32.totalorder %s14, 1
    %p100 = por %p98, %p99
    %p101 = scmp.ne.s32.totalorder %s90, %s91
    %p102 = scmp.eq.s32.totalorder %s14, 0
    %p103 = por %p101, %p102
    %p104 = scmp.ne.s32.totalorder %s90, %s91
    %p105 = scmp.eq.s32.totalorder %s15, 1
    %p106 = por %p104, %p105
    %p108 = scmp.ne.s32.totalorder %s91, %s107
    %p109 = scmp.eq.s32.totalorder %s15, 0
    %p110 = por %p108, %p109
    %p111 = scmp.le.s32.totalorder 1, %s9
    %p112 = scmp.lt.s32.totalorder %s9, 3
    %p113 = pnand %p111, %p112
    %p114 = pneg %p113
    // Predicated region
    $region9: #{tpu_custom_call.1} parent=5 // pred_check
      _
    $region10: #{tpu_custom_call.1} parent=5 // pred_check_branch
      %116 = sbr.rel (%p113) target = $region12
    $region11: #{tpu_custom_call.1} parent=5 // pred_region
      %s117 = ssub.s32 %s9, 1
      // Predicated region
      $region13: #{tpu_custom_call.1} parent=11 // pred_check
        %p118 = pneg %p56
      $region14: #{tpu_custom_call.1} parent=11 // pred_check_branch
        %120 = sbr.rel (%p118) target = $region16
      $region15: #{tpu_custom_call.1} parent=11 // pred_region
        _
      $region16: #{tpu_custom_call.1} parent=11 // pred_fallthru
        _
      // Predicated region
      $region17: #{tpu_custom_call.1} parent=11 // pred_check
        %p121 = pneg %p77
      $region18: #{tpu_custom_call.1} parent=11 // pred_check_branch
        %123 = sbr.rel (%p121) target = $region20
      $region19: #{tpu_custom_call.1} parent=11 // pred_region
        _
      $region20: #{tpu_custom_call.1} parent=11 // pred_fallthru
        _
    $region12: #{tpu_custom_call.1} parent=5 // pred_fallthru
      _
    %p124 = scmp.lt.s32.totalorder %s9, 2
    // Predicated region
    $region21: #{tpu_custom_call.1} parent=5 // pred_check
      %p125 = pneg %p124
    $region22: #{tpu_custom_call.1} parent=5 // pred_check_branch
      %127 = sbr.rel (%p125) target = $region24
    $region23: #{tpu_custom_call.1} parent=5 // pred_region
      // Predicated region
      $region25: #{tpu_custom_call.1} parent=23 // pred_check
        %p128 = pneg %p29
      $region26: #{tpu_custom_call.1} parent=23 // pred_check_branch
        %130 = sbr.rel (%p128) target = $region28
      $region27: #{tpu_custom_call.1} parent=23 // pred_region
        %s131 = smul.u32 64, %s9
        %p132 = scmp.lt.s32.totalorder %s131, 127
        %s133 = scalar_select %p132, %s131, 127
        %s134 = smul.addr %s133, 2
        %s135 = smul.addr %s134, 4
        %s136 = scalar_lea.vmem %s0, %s135
        %s137 = smul.u32 64, %s9
      $region28: #{tpu_custom_call.1} parent=23 // pred_fallthru
        _
    $region24: #{tpu_custom_call.1} parent=5 // pred_fallthru
      _
    %p138 = scmp.le.s32.totalorder 1, %s9
    %p139 = scmp.lt.s32.totalorder %s9, 3
    %p140 = pnand %p138, %p139
    %p141 = pneg %p140
    // Predicated region
    $region29: #{tpu_custom_call.1} parent=5 // pred_check
      _
    $region30: #{tpu_custom_call.1} parent=5 // pred_check_branch
      %143 = sbr.rel (%p140) target = $region32
    $region31: #{tpu_custom_call.1} parent=5 // pred_region
      %s144 = ssub.s32 %s9, 1
      %s145 = smul.u32 64, %s14
      %p146 = scmp.lt.s32.totalorder %s145, 127
      %s147 = scalar_select %p146, %s145, 127
      %s148 = smul.addr %s147, 2
      %s149 = smul.addr %s148, 4
      %s150 = scalar_lea.vmem %s0, %s149
      %p151 = pneg %p35
      %p152 = pneg %p32
      %p153 = pneg %p56
      %p154 = pneg %p53
      %p155 = pneg %p77
      %p156 = pneg %p74
      %p157 = pneg %p103
      %p158 = pneg %p100
      %s159 = smul.u32 64, %s14
      %p160 = scmp.lt.s32.totalorder %s159, 127
      %s161 = scalar_select %p160, %s159, 127
      %s162 = smul.addr %s161, 8
      %s163 = scalar_lea.vmem %s3, %s162
      %s164 = smul.u32 64, %s14
      %p165 = scmp.lt.s32.totalorder %s164, 127
      %s166 = scalar_select %p165, %s164, 127
      %s167 = smul.addr %s166, 2
      %s168 = smul.addr %s167, 4
      %s169 = scalar_lea.vmem %s0, %s168
      %s170 = smul.u32 64, %s14
      %s171 = smul.u32 64, %s14
      %p172 = scmp.lt.s32.totalorder %s171, 127
      %s173 = scalar_select %p172, %s171, 127
      %s174 = smul.addr %s173, 8
      %s175 = scalar_lea.vmem %s3, %s174
      %s176 = smul.u32 64, %s14
      %v178 = vld [vmem:[%s169] sm:$0xff]
      %v179 = vld [vmem:[%s169 + $0x8] sm:$0xff]
      %v180 = vld [vmem:[%s169 + $0x10] sm:$0xff]
      %v181 = vld [vmem:[%s169 + $0x18] sm:$0xff]
      %v182 = vld [vmem:[%s169 + $0x20] sm:$0xff]
      %v183 = vld [vmem:[%s169 + $0x28] sm:$0xff]
      %v184 = vld [vmem:[%s169 + $0x30] sm:$0xff]
      %v185 = vld [vmem:[%s169 + $0x38] sm:$0xff]
      %v186 = vld [vmem:[%s169 + $0x40] sm:$0xff]
      %v187 = vld [vmem:[%s169 + $0x48] sm:$0xff]
      %v188 = vld [vmem:[%s169 + $0x50] sm:$0xff]
      %v189 = vld [vmem:[%s169 + $0x58] sm:$0xff]
      %v190 = vld [vmem:[%s169 + $0x60] sm:$0xff]
      %v191 = vld [vmem:[%s169 + $0x68] sm:$0xff]
      %v192 = vld [vmem:[%s169 + $0x70] sm:$0xff]
      %v193 = vld [vmem:[%s169 + $0x78] sm:$0xff]
      %v194 = vld [vmem:[%s169 + $0x80] sm:$0xff]
      %v195 = vld [vmem:[%s169 + $0x88] sm:$0xff]
      %v196 = vld [vmem:[%s169 + $0x90] sm:$0xff]
      %v197 = vld [vmem:[%s169 + $0x98] sm:$0xff]
      %v198 = vld [vmem:[%s169 + $0xa0] sm:$0xff]
      %v199 = vld [vmem:[%s169 + $0xa8] sm:$0xff]
      %v200 = vld [vmem:[%s169 + $0xb0] sm:$0xff]
      %v201 = vld [vmem:[%s169 + $0xb8] sm:$0xff]
      %v202 = vld [vmem:[%s169 + $0xc0] sm:$0xff]
      %v203 = vld [vmem:[%s169 + $0xc8] sm:$0xff]
      %v204 = vld [vmem:[%s169 + $0xd0] sm:$0xff]
      %v205 = vld [vmem:[%s169 + $0xd8] sm:$0xff]
      %v206 = vld [vmem:[%s169 + $0xe0] sm:$0xff]
      %v207 = vld [vmem:[%s169 + $0xe8] sm:$0xff]
      %v208 = vld [vmem:[%s169 + $0xf0] sm:$0xff]
      %v209 = vld [vmem:[%s169 + $0xf8] sm:$0xff]
      %v210 = vld [vmem:[%s169 + $0x100] sm:$0xff]
      %v211 = vld [vmem:[%s169 + $0x108] sm:$0xff]
      %v212 = vld [vmem:[%s169 + $0x110] sm:$0xff]
      %v213 = vld [vmem:[%s169 + $0x118] sm:$0xff]
      %v214 = vld [vmem:[%s169 + $0x120] sm:$0xff]
      %v215 = vld [vmem:[%s169 + $0x128] sm:$0xff]
      %v216 = vld [vmem:[%s169 + $0x130] sm:$0xff]
      %v217 = vld [vmem:[%s169 + $0x138] sm:$0xff]
      %v218 = vld [vmem:[%s169 + $0x140] sm:$0xff]
      %v219 = vld [vmem:[%s169 + $0x148] sm:$0xff]
      %v220 = vld [vmem:[%s169 + $0x150] sm:$0xff]
      %v221 = vld [vmem:[%s169 + $0x158] sm:$0xff]
      %v222 = vld [vmem:[%s169 + $0x160] sm:$0xff]
      %v223 = vld [vmem:[%s169 + $0x168] sm:$0xff]
      %v224 = vld [vmem:[%s169 + $0x170] sm:$0xff]
      %v225 = vld [vmem:[%s169 + $0x178] sm:$0xff]
      %v226 = vld [vmem:[%s169 + $0x180] sm:$0xff]
      %v227 = vld [vmem:[%s169 + $0x188] sm:$0xff]
      %v228 = vld [vmem:[%s169 + $0x190] sm:$0xff]
      %v229 = vld [vmem:[%s169 + $0x198] sm:$0xff]
      %v230 = vld [vmem:[%s169 + $0x1a0] sm:$0xff]
      %v231 = vld [vmem:[%s169 + $0x1a8] sm:$0xff]
      %v232 = vld [vmem:[%s169 + $0x1b0] sm:$0xff]
      %v233 = vld [vmem:[%s169 + $0x1b8] sm:$0xff]
      %v234 = vld [vmem:[%s169 + $0x1c0] sm:$0xff]
      %v235 = vld [vmem:[%s169 + $0x1c8] sm:$0xff]
      %v236 = vld [vmem:[%s169 + $0x1d0] sm:$0xff]
      %v237 = vld [vmem:[%s169 + $0x1d8] sm:$0xff]
      %v238 = vld [vmem:[%s169 + $0x1e0] sm:$0xff]
      %v239 = vld [vmem:[%s169 + $0x1e8] sm:$0xff]
      %v240 = vld [vmem:[%s169 + $0x1f0] sm:$0xff]
      %v241 = vld [vmem:[%s169 + $0x1f8] sm:$0xff]
      %v242 = vld [vmem:[%s1] sm:$0xf]
      %v243 = vld [vmem:[%s1 + $0x4] sm:$0xf]
      %v244 = vld [vmem:[%s1 + $0x8] sm:$0xf]
      %v245 = vld [vmem:[%s1 + $0xc] sm:$0xf]
      %v246 = vld [vmem:[%s1 + $0x10] sm:$0xf]
      %v247 = vld [vmem:[%s1 + $0x14] sm:$0xf]
      %v248 = vld [vmem:[%s1 + $0x18] sm:$0xf]
      %v249 = vld [vmem:[%s1 + $0x1c] sm:$0xf]
      %v250 = vld [vmem:[%s1 + $0x20] sm:$0xf]
      %v251 = vld [vmem:[%s1 + $0x24] sm:$0xf]
      %v252 = vld [vmem:[%s1 + $0x28] sm:$0xf]
      %v253 = vld [vmem:[%s1 + $0x2c] sm:$0xf]
      %v254 = vld [vmem:[%s1 + $0x30] sm:$0xf]
      %v255 = vld [vmem:[%s1 + $0x34] sm:$0xf]
      %v256 = vld [vmem:[%s1 + $0x38] sm:$0xf]
      %v257 = vld [vmem:[%s1 + $0x3c] sm:$0xf]
      %v258 = vld [vmem:[%s1 + $0x40] sm:$0xf]
      %v259 = vld [vmem:[%s1 + $0x44] sm:$0xf]
      %v260 = vld [vmem:[%s1 + $0x48] sm:$0x3]
      %v261 = vld [vmem:[%s2] sm:$0x1]
      %v263 = vperm.slane %v261, 0
      %v329 = vunpack.c.l.b16 %v178
      %v330 = vunpack.c.h.b16 %v178
      %v331 = vunpack.c.l.b16 %v179
      %v332 = vunpack.c.h.b16 %v179
      %v333 = vunpack.c.l.b16 %v180
      %v334 = vunpack.c.h.b16 %v180
      %v335 = vunpack.c.l.b16 %v181
      %v336 = vunpack.c.h.b16 %v181
      %v337 = vunpack.c.l.b16 %v182
      %v338 = vunpack.c.h.b16 %v182
      %v339 = vunpack.c.l.b16 %v183
      %v340 = vunpack.c.h.b16 %v183
      %v341 = vunpack.c.l.b16 %v184
      %v342 = vunpack.c.h.b16 %v184
      %v343 = vunpack.c.l.b16 %v185
      %v344 = vunpack.c.h.b16 %v185
      %v345 = vunpack.c.l.b16 %v186
      %v346 = vunpack.c.h.b16 %v186
      %v347 = vunpack.c.l.b16 %v187
      %v348 = vunpack.c.h.b16 %v187
      %v349 = vunpack.c.l.b16 %v188
      %v350 = vunpack.c.h.b16 %v188
      %v351 = vunpack.c.l.b16 %v189
      %v352 = vunpack.c.h.b16 %v189
      %v353 = vunpack.c.l.b16 %v190
      %v354 = vunpack.c.h.b16 %v190
      %v355 = vunpack.c.l.b16 %v191
      %v356 = vunpack.c.h.b16 %v191
      %v357 = vunpack.c.l.b16 %v192
      %v358 = vunpack.c.h.b16 %v192
      %v359 = vunpack.c.l.b16 %v193
      %v360 = vunpack.c.h.b16 %v193
      %v361 = vunpack.c.l.b16 %v194
      %v362 = vunpack.c.h.b16 %v194
      %v363 = vunpack.c.l.b16 %v195
      %v364 = vunpack.c.h.b16 %v195
      %v365 = vunpack.c.l.b16 %v196
      %v366 = vunpack.c.h.b16 %v196
      %v367 = vunpack.c.l.b16 %v197
      %v368 = vunpack.c.h.b16 %v197
      %v369 = vunpack.c.l.b16 %v198
      %v370 = vunpack.c.h.b16 %v198
      %v371 = vunpack.c.l.b16 %v199
      %v372 = vunpack.c.h.b16 %v199
      %v373 = vunpack.c.l.b16 %v200
      %v374 = vunpack.c.h.b16 %v200
      %v375 = vunpack.c.l.b16 %v201
      %v376 = vunpack.c.h.b16 %v201
      %v377 = vunpack.c.l.b16 %v202
      %v378 = vunpack.c.h.b16 %v202
      %v379 = vunpack.c.l.b16 %v203
      %v380 = vunpack.c.h.b16 %v203
      %v381 = vunpack.c.l.b16 %v204
      %v382 = vunpack.c.h.b16 %v204
      %v383 = vunpack.c.l.b16 %v205
      %v384 = vunpack.c.h.b16 %v205
      %v385 = vunpack.c.l.b16 %v206
      %v386 = vunpack.c.h.b16 %v206
      %v387 = vunpack.c.l.b16 %v207
      %v388 = vunpack.c.h.b16 %v207
      %v389 = vunpack.c.l.b16 %v208
      %v390 = vunpack.c.h.b16 %v208
      %v391 = vunpack.c.l.b16 %v209
      %v392 = vunpack.c.h.b16 %v209
      %v393 = vunpack.c.l.b16 %v210
      %v394 = vunpack.c.h.b16 %v210
      %v395 = vunpack.c.l.b16 %v211
      %v396 = vunpack.c.h.b16 %v211
      %v397 = vunpack.c.l.b16 %v212
      %v398 = vunpack.c.h.b16 %v212
      %v399 = vunpack.c.l.b16 %v213
      %v400 = vunpack.c.h.b16 %v213
      %v401 = vunpack.c.l.b16 %v214
      %v402 = vunpack.c.h.b16 %v214
      %v403 = vunpack.c.l.b16 %v215
      %v404 = vunpack.c.h.b16 %v215
      %v405 = vunpack.c.l.b16 %v216
      %v406 = vunpack.c.h.b16 %v216
      %v407 = vunpack.c.l.b16 %v217
      %v408 = vunpack.c.h.b16 %v217
      %v409 = vunpack.c.l.b16 %v218
      %v410 = vunpack.c.h.b16 %v218
      %v411 = vunpack.c.l.b16 %v219
      %v412 = vunpack.c.h.b16 %v219
      %v413 = vunpack.c.l.b16 %v220
      %v414 = vunpack.c.h.b16 %v220
      %v415 = vunpack.c.l.b16 %v221
      %v416 = vunpack.c.h.b16 %v221
      %v417 = vunpack.c.l.b16 %v222
      %v418 = vunpack.c.h.b16 %v222
      %v419 = vunpack.c.l.b16 %v223
      %v420 = vunpack.c.h.b16 %v223
      %v421 = vunpack.c.l.b16 %v224
      %v422 = vunpack.c.h.b16 %v224
      %v423 = vunpack.c.l.b16 %v225
      %v424 = vunpack.c.h.b16 %v225
      %v425 = vunpack.c.l.b16 %v226
      %v426 = vunpack.c.h.b16 %v226
      %v427 = vunpack.c.l.b16 %v227
      %v428 = vunpack.c.h.b16 %v227
      %v429 = vunpack.c.l.b16 %v228
      %v430 = vunpack.c.h.b16 %v228
      %v431 = vunpack.c.l.b16 %v229
      %v432 = vunpack.c.h.b16 %v229
      %v433 = vunpack.c.l.b16 %v230
      %v434 = vunpack.c.h.b16 %v230
      %v435 = vunpack.c.l.b16 %v231
      %v436 = vunpack.c.h.b16 %v231
      %v437 = vunpack.c.l.b16 %v232
      %v438 = vunpack.c.h.b16 %v232
      %v439 = vunpack.c.l.b16 %v233
      %v440 = vunpack.c.h.b16 %v233
      %v441 = vunpack.c.l.b16 %v234
      %v442 = vunpack.c.h.b16 %v234
      %v443 = vunpack.c.l.b16 %v235
      %v444 = vunpack.c.h.b16 %v235
      %v445 = vunpack.c.l.b16 %v236
      %v446 = vunpack.c.h.b16 %v236
      %v447 = vunpack.c.l.b16 %v237
      %v448 = vunpack.c.h.b16 %v237
      %v449 = vunpack.c.l.b16 %v238
      %v450 = vunpack.c.h.b16 %v238
      %v451 = vunpack.c.l.b16 %v239
      %v452 = vunpack.c.h.b16 %v239
      %v453 = vunpack.c.l.b16 %v240
      %v454 = vunpack.c.h.b16 %v240
      %v455 = vunpack.c.l.b16 %v241
      %v456 = vunpack.c.h.b16 %v241
      %v457 = vpack.c.b16 %v331, %v329
      %v458 = vpack.c.b16 %v332, %v330
      %v459 = vpack.c.b16 %v335, %v333
      %v460 = vpack.c.b16 %v336, %v334
      %v461 = vpack.c.b16 %v339, %v337
      %v462 = vpack.c.b16 %v340, %v338
      %v463 = vpack.c.b16 %v343, %v341
      %v464 = vpack.c.b16 %v344, %v342
      %v465 = vpack.c.b16 %v347, %v345
      %v466 = vpack.c.b16 %v348, %v346
      %v467 = vpack.c.b16 %v351, %v349
      %v468 = vpack.c.b16 %v352, %v350
      %v469 = vpack.c.b16 %v355, %v353
      %v470 = vpack.c.b16 %v356, %v354
      %v471 = vpack.c.b16 %v359, %v357
      %v472 = vpack.c.b16 %v360, %v358
      %v473 = vpack.c.b16 %v363, %v361
      %v474 = vpack.c.b16 %v364, %v362
      %v475 = vpack.c.b16 %v367, %v365
      %v476 = vpack.c.b16 %v368, %v366
      %v477 = vpack.c.b16 %v371, %v369
      %v478 = vpack.c.b16 %v372, %v370
      %v479 = vpack.c.b16 %v375, %v373
      %v480 = vpack.c.b16 %v376, %v374
      %v481 = vpack.c.b16 %v379, %v377
      %v482 = vpack.c.b16 %v380, %v378
      %v483 = vpack.c.b16 %v383, %v381
      %v484 = vpack.c.b16 %v384, %v382
      %v485 = vpack.c.b16 %v387, %v385
      %v486 = vpack.c.b16 %v388, %v386
      %v487 = vpack.c.b16 %v391, %v389
      %v488 = vpack.c.b16 %v392, %v390
      %v489 = vpack.c.b16 %v395, %v393
      %v490 = vpack.c.b16 %v396, %v394
      %v491 = vpack.c.b16 %v399, %v397
      %v492 = vpack.c.b16 %v400, %v398
      %v493 = vpack.c.b16 %v403, %v401
      %v494 = vpack.c.b16 %v404, %v402
      %v495 = vpack.c.b16 %v407, %v405
      %v496 = vpack.c.b16 %v408, %v406
      %v497 = vpack.c.b16 %v411, %v409
      %v498 = vpack.c.b16 %v412, %v410
      %v499 = vpack.c.b16 %v415, %v413
      %v500 = vpack.c.b16 %v416, %v414
      %v501 = vpack.c.b16 %v419, %v417
      %v502 = vpack.c.b16 %v420, %v418
      %v503 = vpack.c.b16 %v423, %v421
      %v504 = vpack.c.b16 %v424, %v422
      %v505 = vpack.c.b16 %v427, %v425
      %v506 = vpack.c.b16 %v428, %v426
      %v507 = vpack.c.b16 %v431, %v429
      %v508 = vpack.c.b16 %v432, %v430
      %v509 = vpack.c.b16 %v435, %v433
      %v510 = vpack.c.b16 %v436, %v434
      %v511 = vpack.c.b16 %v439, %v437
      %v512 = vpack.c.b16 %v440, %v438
      %v513 = vpack.c.b16 %v443, %v441
      %v514 = vpack.c.b16 %v444, %v442
      %v515 = vpack.c.b16 %v447, %v445
      %v516 = vpack.c.b16 %v448, %v446
      %v517 = vpack.c.b16 %v451, %v449
      %v518 = vpack.c.b16 %v452, %v450
      %v519 = vpack.c.b16 %v455, %v453
      %v520 = vpack.c.b16 %v456, %v454
      %v572 = vunpack.c.l.b16 %v242
      %v573 = vunpack.c.l.b16 %v243
      %v574 = vunpack.c.l.b16 %v244
      %v575 = vunpack.c.l.b16 %v245
      %v576 = vunpack.c.l.b16 %v246
      %v577 = vunpack.c.l.b16 %v247
      %v578 = vunpack.c.l.b16 %v248
      %v579 = vunpack.c.l.b16 %v249
      %v580 = vunpack.c.l.b16 %v250
      %v581 = vunpack.c.l.b16 %v251
      %v582 = vunpack.c.l.b16 %v252
      %v583 = vunpack.c.l.b16 %v253
      %v584 = vunpack.c.l.b16 %v254
      %v585 = vunpack.c.l.b16 %v255
      %v586 = vunpack.c.l.b16 %v256
      %v587 = vunpack.c.l.b16 %v257
      %v588 = vunpack.c.l.b16 %v258
      %v589 = vunpack.c.l.b16 %v259
      %v590 = vunpack.c.l.b16 %v260
      %v591 = vpack.c.b16 %v573, %v572
      %v592 = vpack.c.b16 %v575, %v574
      %v593 = vpack.c.b16 %v577, %v576
      %v594 = vpack.c.b16 %v579, %v578
      %v595 = vpack.c.b16 %v581, %v580
      %v596 = vpack.c.b16 %v583, %v582
      %v597 = vpack.c.b16 %v585, %v584
      %v598 = vpack.c.b16 %v587, %v586
      %v599 = vpack.c.b16 %v589, %v588
      %v600 = vpack.c.b16 %v590, %v590
      %vm610 = vcmask 154624
      %v612 = vsel %vm610, %v458, 0
      %v615 = vsel %vm610, %v460, 0
      %v618 = vsel %vm610, %v462, 0
      %v621 = vsel %vm610, %v464, 0
      %v624 = vsel %vm610, %v466, 0
      %v627 = vsel %vm610, %v468, 0
      %v630 = vsel %vm610, %v470, 0
      %v633 = vsel %vm610, %v472, 0
      %v636 = vsel %vm610, %v474, 0
      %v639 = vsel %vm610, %v476, 0
      %v642 = vsel %vm610, %v478, 0
      %v645 = vsel %vm610, %v480, 0
      %v648 = vsel %vm610, %v482, 0
      %v651 = vsel %vm610, %v484, 0
      %v654 = vsel %vm610, %v486, 0
      %v657 = vsel %vm610, %v488, 0
      %v660 = vsel %vm610, %v490, 0
      %v663 = vsel %vm610, %v492, 0
      %v666 = vsel %vm610, %v494, 0
      %v669 = vsel %vm610, %v496, 0
      %v672 = vsel %vm610, %v498, 0
      %v675 = vsel %vm610, %v500, 0
      %v678 = vsel %vm610, %v502, 0
      %v681 = vsel %vm610, %v504, 0
      %v684 = vsel %vm610, %v506, 0
      %v687 = vsel %vm610, %v508, 0
      %v690 = vsel %vm610, %v510, 0
      %v693 = vsel %vm610, %v512, 0
      %v696 = vsel %vm610, %v514, 0
      %v699 = vsel %vm610, %v516, 0
      %v702 = vsel %vm610, %v518, 0
      %v705 = vsel %vm610, %v520, 0
      %vm707 = vcmask 1040384
      %vm708 = vcmask 1041408
      %v709 = vsel %vm707, 4294967295, 65535
      %v710 = vsel %vm708, %v709, 0
      %v712 = vand.u32 %v600, %v710
      %714 = vmatpush.bf16.msra.mxu0 %v598
      %715 = vmatpush.bf16.msra.mxu0 %v597
      %716 = vmatpush.bf16.msra.mxu0 %v596
      %717 = vmatpush.bf16.msra.mxu0 %v595
      %718 = vmatpush.bf16.msra.mxu0 %v594
      %719 = vmatpush.bf16.msra.mxu0 %v593
      %720 = vmatpush.bf16.msra.mxu0 %v592
      %721 = vmatpush.bf16.msra.mxu0 %v591
      %722 = vmatmul.bf16.gmra.mxu0 %v457
      %v723 = vpop.f32.mrf.mxu0
      %v724 = vadd.f32 %v263, %v723
      %v725 = vpop.f32.mrf.mxu0
      %v726 = vadd.f32 %v263, %v725
      %727 = vmatmul.bf16.gmra.mxu0 %v459
      %v728 = vpop.f32.mrf.mxu0
      %v729 = vadd.f32 %v263, %v728
      %v730 = vpop.f32.mrf.mxu0
      %v731 = vadd.f32 %v263, %v730
      %732 = vmatmul.bf16.gmra.mxu0 %v461
      %v733 = vpop.f32.mrf.mxu0
      %v734 = vadd.f32 %v263, %v733
      %v735 = vpop.f32.mrf.mxu0
      %v736 = vadd.f32 %v263, %v735
      %737 = vmatmul.bf16.gmra.mxu0 %v463
      %v738 = vpop.f32.mrf.mxu0
      %v739 = vadd.f32 %v263, %v738
      %v740 = vpop.f32.mrf.mxu0
      %v741 = vadd.f32 %v263, %v740
      %742 = vmatmul.bf16.gmra.mxu0 %v465
      %v743 = vpop.f32.mrf.mxu0
      %v744 = vadd.f32 %v263, %v743
      %v745 = vpop.f32.mrf.mxu0
      %v746 = vadd.f32 %v263, %v745
      %747 = vmatmul.bf16.gmra.mxu0 %v467
      %v748 = vpop.f32.mrf.mxu0
      %v749 = vadd.f32 %v263, %v748
      %v750 = vpop.f32.mrf.mxu0
      %v751 = vadd.f32 %v263, %v750
      %752 = vmatmul.bf16.gmra.mxu0 %v469
      %v753 = vpop.f32.mrf.mxu0
      %v754 = vadd.f32 %v263, %v753
      %v755 = vpop.f32.mrf.mxu0
      %v756 = vadd.f32 %v263, %v755
      %757 = vmatmul.bf16.gmra.mxu0 %v471
      %v758 = vpop.f32.mrf.mxu0
      %v759 = vadd.f32 %v263, %v758
      %v760 = vpop.f32.mrf.mxu0
      %v761 = vadd.f32 %v263, %v760
      %762 = vmatmul.bf16.gmra.mxu0 %v473
      %v763 = vpop.f32.mrf.mxu0
      %v764 = vadd.f32 %v263, %v763
      %v765 = vpop.f32.mrf.mxu0
      %v766 = vadd.f32 %v263, %v765
      %767 = vmatmul.bf16.gmra.mxu0 %v475
      %v768 = vpop.f32.mrf.mxu0
      %v769 = vadd.f32 %v263, %v768
      %v770 = vpop.f32.mrf.mxu0
      %v771 = vadd.f32 %v263, %v770
      %772 = vmatmul.bf16.gmra.mxu0 %v477
      %v773 = vpop.f32.mrf.mxu0
      %v774 = vadd.f32 %v263, %v773
      %v775 = vpop.f32.mrf.mxu0
      %v776 = vadd.f32 %v263, %v775
      %777 = vmatmul.bf16.gmra.mxu0 %v479
      %v778 = vpop.f32.mrf.mxu0
      %v779 = vadd.f32 %v263, %v778
      %v780 = vpop.f32.mrf.mxu0
      %v781 = vadd.f32 %v263, %v780
      %782 = vmatmul.bf16.gmra.mxu0 %v481
      %v783 = vpop.f32.mrf.mxu0
      %v784 = vadd.f32 %v263, %v783
      %v785 = vpop.f32.mrf.mxu0
      %v786 = vadd.f32 %v263, %v785
      %787 = vmatmul.bf16.gmra.mxu0 %v483
      %v788 = vpop.f32.mrf.mxu0
      %v789 = vadd.f32 %v263, %v788
      %v790 = vpop.f32.mrf.mxu0
      %v791 = vadd.f32 %v263, %v790
      %792 = vmatmul.bf16.gmra.mxu0 %v485
      %v793 = vpop.f32.mrf.mxu0
      %v794 = vadd.f32 %v263, %v793
      %v795 = vpop.f32.mrf.mxu0
      %v796 = vadd.f32 %v263, %v795
      %797 = vmatmul.bf16.gmra.mxu0 %v487
      %v798 = vpop.f32.mrf.mxu0
      %v799 = vadd.f32 %v263, %v798
      %v800 = vpop.f32.mrf.mxu0
      %v801 = vadd.f32 %v263, %v800
      %802 = vmatmul.bf16.gmra.mxu0 %v489
      %v803 = vpop.f32.mrf.mxu0
      %v804 = vadd.f32 %v263, %v803
      %v805 = vpop.f32.mrf.mxu0
      %v806 = vadd.f32 %v263, %v805
      %807 = vmatmul.bf16.gmra.mxu0 %v491
      %v808 = vpop.f32.mrf.mxu0
      %v809 = vadd.f32 %v263, %v808
      %v810 = vpop.f32.mrf.mxu0
      %v811 = vadd.f32 %v263, %v810
      %812 = vmatmul.bf16.gmra.mxu0 %v493
      %v813 = vpop.f32.mrf.mxu0
      %v814 = vadd.f32 %v263, %v813
      %v815 = vpop.f32.mrf.mxu0
      %v816 = vadd.f32 %v263, %v815
      %817 = vmatmul.bf16.gmra.mxu0 %v495
      %v818 = vpop.f32.mrf.mxu0
      %v819 = vadd.f32 %v263, %v818
      %v820 = vpop.f32.mrf.mxu0
      %v821 = vadd.f32 %v263, %v820
      %822 = vmatmul.bf16.gmra.mxu0 %v497
      %v823 = vpop.f32.mrf.mxu0
      %v824 = vadd.f32 %v263, %v823
      %v825 = vpop.f32.mrf.mxu0
      %v826 = vadd.f32 %v263, %v825
      %827 = vmatmul.bf16.gmra.mxu0 %v499
      %v828 = vpop.f32.mrf.mxu0
      %v829 = vadd.f32 %v263, %v828
      %v830 = vpop.f32.mrf.mxu0
      %v831 = vadd.f32 %v263, %v830
      %832 = vmatmul.bf16.gmra.mxu0 %v501
      %v833 = vpop.f32.mrf.mxu0
      %v834 = vadd.f32 %v263, %v833
      %v835 = vpop.f32.mrf.mxu0
      %v836 = vadd.f32 %v263, %v835
      %837 = vmatmul.bf16.gmra.mxu0 %v503
      %v838 = vpop.f32.mrf.mxu0
      %v839 = vadd.f32 %v263, %v838
      %v840 = vpop.f32.mrf.mxu0
      %v841 = vadd.f32 %v263, %v840
      %842 = vmatmul.bf16.gmra.mxu0 %v505
      %v843 = vpop.f32.mrf.mxu0
      %v844 = vadd.f32 %v263, %v843
      %v845 = vpop.f32.mrf.mxu0
      %v846 = vadd.f32 %v263, %v845
      %847 = vmatmul.bf16.gmra.mxu0 %v507
      %v848 = vpop.f32.mrf.mxu0
      %v849 = vadd.f32 %v263, %v848
      %v850 = vpop.f32.mrf.mxu0
      %v851 = vadd.f32 %v263, %v850
      %852 = vmatmul.bf16.gmra.mxu0 %v509
      %v853 = vpop.f32.mrf.mxu0
      %v854 = vadd.f32 %v263, %v853
      %v855 = vpop.f32.mrf.mxu0
      %v856 = vadd.f32 %v263, %v855
      %857 = vmatmul.bf16.gmra.mxu0 %v511
      %v858 = vpop.f32.mrf.mxu0
      %v859 = vadd.f32 %v263, %v858
      %v860 = vpop.f32.mrf.mxu0
      %v861 = vadd.f32 %v263, %v860
      %862 = vmatmul.bf16.gmra.mxu0 %v513
      %v863 = vpop.f32.mrf.mxu0
      %v864 = vadd.f32 %v263, %v863
      %v865 = vpop.f32.mrf.mxu0
      %v866 = vadd.f32 %v263, %v865
      %867 = vmatmul.bf16.gmra.mxu0 %v515
      %v868 = vpop.f32.mrf.mxu0
      %v869 = vadd.f32 %v263, %v868
      %v870 = vpop.f32.mrf.mxu0
      %v871 = vadd.f32 %v263, %v870
      %872 = vmatmul.bf16.gmra.mxu0 %v517
      %v873 = vpop.f32.mrf.mxu0
      %v874 = vadd.f32 %v263, %v873
      %v875 = vpop.f32.mrf.mxu0
      %v876 = vadd.f32 %v263, %v875
      %877 = vmatmul.bf16.gmra.mxu0 %v519
      %v878 = vpop.f32.mrf.mxu0
      %v879 = vadd.f32 %v263, %v878
      %v880 = vpop.f32.mrf.mxu0
      %v881 = vadd.f32 %v263, %v880
      %882 = vdwg.mxu0
      %883 = vmatpush.bf16.msra.mxu0 0
      %884 = vmatpush.bf16.msra.mxu0 0
      %885 = vmatpush.bf16.msra.mxu0 0
      %886 = vmatpush.bf16.msra.mxu0 0
      %887 = vmatpush.bf16.msra.mxu0 0
      %888 = vmatpush.bf16.msra.mxu0 0
      %889 = vmatpush.bf16.msra.mxu0 %v712
      %890 = vmatpush.bf16.msra.mxu0 %v599
      %891 = vmatmul.bf16.gmra.mxu0 %v612
      %v892 = vpop.f32.mrf.mxu0
      %v893 = vadd.f32 %v724, %v892
      %v894 = vpop.f32.mrf.mxu0
      %v895 = vadd.f32 %v726, %v894
      %896 = vmatmul.bf16.gmra.mxu0 %v615
      %v897 = vpop.f32.mrf.mxu0
      %v898 = vadd.f32 %v729, %v897
      %v899 = vpop.f32.mrf.mxu0
      %v900 = vadd.f32 %v731, %v899
      %901 = vmatmul.bf16.gmra.mxu0 %v618
      %v902 = vpop.f32.mrf.mxu0
      %v903 = vadd.f32 %v734, %v902
      %v904 = vpop.f32.mrf.mxu0
      %v905 = vadd.f32 %v736, %v904
      %906 = vmatmul.bf16.gmra.mxu0 %v621
      %v907 = vpop.f32.mrf.mxu0
      %v908 = vadd.f32 %v739, %v907
      %v909 = vpop.f32.mrf.mxu0
      %v910 = vadd.f32 %v741, %v909
      %911 = vmatmul.bf16.gmra.mxu0 %v624
      %v912 = vpop.f32.mrf.mxu0
      %v913 = vadd.f32 %v744, %v912
      %v914 = vpop.f32.mrf.mxu0
      %v915 = vadd.f32 %v746, %v914
      %916 = vmatmul.bf16.gmra.mxu0 %v627
      %v917 = vpop.f32.mrf.mxu0
      %v918 = vadd.f32 %v749, %v917
      %v919 = vpop.f32.mrf.mxu0
      %v920 = vadd.f32 %v751, %v919
      %921 = vmatmul.bf16.gmra.mxu0 %v630
      %v922 = vpop.f32.mrf.mxu0
      %v923 = vadd.f32 %v754, %v922
      %v924 = vpop.f32.mrf.mxu0
      %v925 = vadd.f32 %v756, %v924
      %926 = vmatmul.bf16.gmra.mxu0 %v633
      %v927 = vpop.f32.mrf.mxu0
      %v928 = vadd.f32 %v759, %v927
      %v929 = vpop.f32.mrf.mxu0
      %v930 = vadd.f32 %v761, %v929
      %931 = vmatmul.bf16.gmra.mxu0 %v636
      %v932 = vpop.f32.mrf.mxu0
      %v933 = vadd.f32 %v764, %v932
      %v934 = vpop.f32.mrf.mxu0
      %v935 = vadd.f32 %v766, %v934
      %936 = vmatmul.bf16.gmra.mxu0 %v639
      %v937 = vpop.f32.mrf.mxu0
      %v938 = vadd.f32 %v769, %v937
      %v939 = vpop.f32.mrf.mxu0
      %v940 = vadd.f32 %v771, %v939
      %941 = vmatmul.bf16.gmra.mxu0 %v642
      %v942 = vpop.f32.mrf.mxu0
      %v943 = vadd.f32 %v774, %v942
      %v944 = vpop.f32.mrf.mxu0
      %v945 = vadd.f32 %v776, %v944
      %946 = vmatmul.bf16.gmra.mxu0 %v645
      %v947 = vpop.f32.mrf.mxu0
      %v948 = vadd.f32 %v779, %v947
      %v949 = vpop.f32.mrf.mxu0
      %v950 = vadd.f32 %v781, %v949
      %951 = vmatmul.bf16.gmra.mxu0 %v648
      %v952 = vpop.f32.mrf.mxu0
      %v953 = vadd.f32 %v784, %v952
      %v954 = vpop.f32.mrf.mxu0
      %v955 = vadd.f32 %v786, %v954
      %956 = vmatmul.bf16.gmra.mxu0 %v651
      %v957 = vpop.f32.mrf.mxu0
      %v958 = vadd.f32 %v789, %v957
      %v959 = vpop.f32.mrf.mxu0
      %v960 = vadd.f32 %v791, %v959
      %961 = vmatmul.bf16.gmra.mxu0 %v654
      %v962 = vpop.f32.mrf.mxu0
      %v963 = vadd.f32 %v794, %v962
      %v964 = vpop.f32.mrf.mxu0
      %v965 = vadd.f32 %v796, %v964
      %966 = vmatmul.bf16.gmra.mxu0 %v657
      %v967 = vpop.f32.mrf.mxu0
      %v968 = vadd.f32 %v799, %v967
      %v969 = vpop.f32.mrf.mxu0
      %v970 = vadd.f32 %v801, %v969
      %971 = vmatmul.bf16.gmra.mxu0 %v660
      %v972 = vpop.f32.mrf.mxu0
      %v973 = vadd.f32 %v804, %v972
      %v974 = vpop.f32.mrf.mxu0
      %v975 = vadd.f32 %v806, %v974
      %976 = vmatmul.bf16.gmra.mxu0 %v663
      %v977 = vpop.f32.mrf.mxu0
      %v978 = vadd.f32 %v809, %v977
      %v979 = vpop.f32.mrf.mxu0
      %v980 = vadd.f32 %v811, %v979
      %981 = vmatmul.bf16.gmra.mxu0 %v666
      %v982 = vpop.f32.mrf.mxu0
      %v983 = vadd.f32 %v814, %v982
      %v984 = vpop.f32.mrf.mxu0
      %v985 = vadd.f32 %v816, %v984
      %986 = vmatmul.bf16.gmra.mxu0 %v669
      %v987 = vpop.f32.mrf.mxu0
      %v988 = vadd.f32 %v819, %v987
      %v989 = vpop.f32.mrf.mxu0
      %v990 = vadd.f32 %v821, %v989
      %991 = vmatmul.bf16.gmra.mxu0 %v672
      %v992 = vpop.f32.mrf.mxu0
      %v993 = vadd.f32 %v824, %v992
      %v994 = vpop.f32.mrf.mxu0
      %v995 = vadd.f32 %v826, %v994
      %996 = vmatmul.bf16.gmra.mxu0 %v675
      %v997 = vpop.f32.mrf.mxu0
      %v998 = vadd.f32 %v829, %v997
      %v999 = vpop.f32.mrf.mxu0
      %v1000 = vadd.f32 %v831, %v999
      %1001 = vmatmul.bf16.gmra.mxu0 %v678
      %v1002 = vpop.f32.mrf.mxu0
      %v1003 = vadd.f32 %v834, %v1002
      %v1004 = vpop.f32.mrf.mxu0
      %v1005 = vadd.f32 %v836, %v1004
      %1006 = vmatmul.bf16.gmra.mxu0 %v681
      %v1007 = vpop.f32.mrf.mxu0
      %v1008 = vadd.f32 %v839, %v1007
      %v1009 = vpop.f32.mrf.mxu0
      %v1010 = vadd.f32 %v841, %v1009
      %1011 = vmatmul.bf16.gmra.mxu0 %v684
      %v1012 = vpop.f32.mrf.mxu0
      %v1013 = vadd.f32 %v844, %v1012
      %v1014 = vpop.f32.mrf.mxu0
      %v1015 = vadd.f32 %v846, %v1014
      %1016 = vmatmul.bf16.gmra.mxu0 %v687
      %v1017 = vpop.f32.mrf.mxu0
      %v1018 = vadd.f32 %v849, %v1017
      %v1019 = vpop.f32.mrf.mxu0
      %v1020 = vadd.f32 %v851, %v1019
      %1021 = vmatmul.bf16.gmra.mxu0 %v690
      %v1022 = vpop.f32.mrf.mxu0
      %v1023 = vadd.f32 %v854, %v1022
      %v1024 = vpop.f32.mrf.mxu0
      %v1025 = vadd.f32 %v856, %v1024
      %1026 = vmatmul.bf16.gmra.mxu0 %v693
      %v1027 = vpop.f32.mrf.mxu0
      %v1028 = vadd.f32 %v859, %v1027
      %v1029 = vpop.f32.mrf.mxu0
      %v1030 = vadd.f32 %v861, %v1029
      %1031 = vmatmul.bf16.gmra.mxu0 %v696
      %v1032 = vpop.f32.mrf.mxu0
      %v1033 = vadd.f32 %v864, %v1032
      %v1034 = vpop.f32.mrf.mxu0
      %v1035 = vadd.f32 %v866, %v1034
      %1036 = vmatmul.bf16.gmra.mxu0 %v699
      %v1037 = vpop.f32.mrf.mxu0
      %v1038 = vadd.f32 %v869, %v1037
      %v1039 = vpop.f32.mrf.mxu0
      %v1040 = vadd.f32 %v871, %v1039
      %1041 = vmatmul.bf16.gmra.mxu0 %v702
      %v1042 = vpop.f32.mrf.mxu0
      %v1043 = vadd.f32 %v874, %v1042
      %v1044 = vpop.f32.mrf.mxu0
      %v1045 = vadd.f32 %v876, %v1044
      %1046 = vmatmul.bf16.gmra.mxu0 %v705
      %v1047 = vpop.f32.mrf.mxu0
      %v1048 = vadd.f32 %v879, %v1047
      %v1049 = vpop.f32.mrf.mxu0
      %v1050 = vadd.f32 %v881, %v1049
      %1051 = vdwg.mxu0
      %v1052 = vmax.f32 %v893, 0.0
      %v1053 = vmax.f32 %v895, 0.0
      %v1054 = vmax.f32 %v898, 0.0
      %v1055 = vmax.f32 %v900, 0.0
      %v1056 = vmax.f32 %v903, 0.0
      %v1057 = vmax.f32 %v905, 0.0
      %v1058 = vmax.f32 %v908, 0.0
      %v1059 = vmax.f32 %v910, 0.0
      %v1060 = vmax.f32 %v913, 0.0
      %v1061 = vmax.f32 %v915, 0.0
      %v1062 = vmax.f32 %v918, 0.0
      %v1063 = vmax.f32 %v920, 0.0
      %v1064 = vmax.f32 %v923, 0.0
      %v1065 = vmax.f32 %v925, 0.0
      %v1066 = vmax.f32 %v928, 0.0
      %v1067 = vmax.f32 %v930, 0.0
      %v1068 = vmax.f32 %v933, 0.0
      %v1069 = vmax.f32 %v935, 0.0
      %v1070 = vmax.f32 %v938, 0.0
      %v1071 = vmax.f32 %v940, 0.0
      %v1072 = vmax.f32 %v943, 0.0
      %v1073 = vmax.f32 %v945, 0.0
      %v1074 = vmax.f32 %v948, 0.0
      %v1075 = vmax.f32 %v950, 0.0
      %v1076 = vmax.f32 %v953, 0.0
      %v1077 = vmax.f32 %v955, 0.0
      %v1078 = vmax.f32 %v958, 0.0
      %v1079 = vmax.f32 %v960, 0.0
      %v1080 = vmax.f32 %v963, 0.0
      %v1081 = vmax.f32 %v965, 0.0
      %v1082 = vmax.f32 %v968, 0.0
      %v1083 = vmax.f32 %v970, 0.0
      %v1084 = vmax.f32 %v973, 0.0
      %v1085 = vmax.f32 %v975, 0.0
      %v1086 = vmax.f32 %v978, 0.0
      %v1087 = vmax.f32 %v980, 0.0
      %v1088 = vmax.f32 %v983, 0.0
      %v1089 = vmax.f32 %v985, 0.0
      %v1090 = vmax.f32 %v988, 0.0
      %v1091 = vmax.f32 %v990, 0.0
      %v1092 = vmax.f32 %v993, 0.0
      %v1093 = vmax.f32 %v995, 0.0
      %v1094 = vmax.f32 %v998, 0.0
      %v1095 = vmax.f32 %v1000, 0.0
      %v1096 = vmax.f32 %v1003, 0.0
      %v1097 = vmax.f32 %v1005, 0.0
      %v1098 = vmax.f32 %v1008, 0.0
      %v1099 = vmax.f32 %v1010, 0.0
      %v1100 = vmax.f32 %v1013, 0.0
      %v1101 = vmax.f32 %v1015, 0.0
      %v1102 = vmax.f32 %v1018, 0.0
      %v1103 = vmax.f32 %v1020, 0.0
      %v1104 = vmax.f32 %v1023, 0.0
      %v1105 = vmax.f32 %v1025, 0.0
      %v1106 = vmax.f32 %v1028, 0.0
      %v1107 = vmax.f32 %v1030, 0.0
      %v1108 = vmax.f32 %v1033, 0.0
      %v1109 = vmax.f32 %v1035, 0.0
      %v1110 = vmax.f32 %v1038, 0.0
      %v1111 = vmax.f32 %v1040, 0.0
      %v1112 = vmax.f32 %v1043, 0.0
      %v1113 = vmax.f32 %v1045, 0.0
      %v1114 = vmax.f32 %v1048, 0.0
      %v1115 = vmax.f32 %v1050, 0.0
      %vm1116 = vcmask 523264
      %1117 = vst.msk [vmem:[%s175] sm:$0xff] %vm1116, %v1052
      %1118 = vst.msk [vmem:[%s175 + $0x8] sm:$0xff] %vm1116, %v1053
      %1119 = vst.msk [vmem:[%s175 + $0x10] sm:$0xff] %vm1116, %v1054
      %1120 = vst.msk [vmem:[%s175 + $0x18] sm:$0xff] %vm1116, %v1055
      %1121 = vst.msk [vmem:[%s175 + $0x20] sm:$0xff] %vm1116, %v1056
      %1122 = vst.msk [vmem:[%s175 + $0x28] sm:$0xff] %vm1116, %v1057
      %1123 = vst.msk [vmem:[%s175 + $0x30] sm:$0xff] %vm1116, %v1058
      %1124 = vst.msk [vmem:[%s175 + $0x38] sm:$0xff] %vm1116, %v1059
      %1125 = vst.msk [vmem:[%s175 + $0x40] sm:$0xff] %vm1116, %v1060
      %1126 = vst.msk [vmem:[%s175 + $0x48] sm:$0xff] %vm1116, %v1061
      %1127 = vst.msk [vmem:[%s175 + $0x50] sm:$0xff] %vm1116, %v1062
      %1128 = vst.msk [vmem:[%s175 + $0x58] sm:$0xff] %vm1116, %v1063
      %1129 = vst.msk [vmem:[%s175 + $0x60] sm:$0xff] %vm1116, %v1064
      %1130 = vst.msk [vmem:[%s175 + $0x68] sm:$0xff] %vm1116, %v1065
      %1131 = vst.msk [vmem:[%s175 + $0x70] sm:$0xff] %vm1116, %v1066
      %1132 = vst.msk [vmem:[%s175 + $0x78] sm:$0xff] %vm1116, %v1067
      %1133 = vst.msk [vmem:[%s175 + $0x80] sm:$0xff] %vm1116, %v1068
      %1134 = vst.msk [vmem:[%s175 + $0x88] sm:$0xff] %vm1116, %v1069
      %1135 = vst.msk [vmem:[%s175 + $0x90] sm:$0xff] %vm1116, %v1070
      %1136 = vst.msk [vmem:[%s175 + $0x98] sm:$0xff] %vm1116, %v1071
      %1137 = vst.msk [vmem:[%s175 + $0xa0] sm:$0xff] %vm1116, %v1072
      %1138 = vst.msk [vmem:[%s175 + $0xa8] sm:$0xff] %vm1116, %v1073
      %1139 = vst.msk [vmem:[%s175 + $0xb0] sm:$0xff] %vm1116, %v1074
      %1140 = vst.msk [vmem:[%s175 + $0xb8] sm:$0xff] %vm1116, %v1075
      %1141 = vst.msk [vmem:[%s175 + $0xc0] sm:$0xff] %vm1116, %v1076
      %1142 = vst.msk [vmem:[%s175 + $0xc8] sm:$0xff] %vm1116, %v1077
      %1143 = vst.msk [vmem:[%s175 + $0xd0] sm:$0xff] %vm1116, %v1078
      %1144 = vst.msk [vmem:[%s175 + $0xd8] sm:$0xff] %vm1116, %v1079
      %1145 = vst.msk [vmem:[%s175 + $0xe0] sm:$0xff] %vm1116, %v1080
      %1146 = vst.msk [vmem:[%s175 + $0xe8] sm:$0xff] %vm1116, %v1081
      %1147 = vst.msk [vmem:[%s175 + $0xf0] sm:$0xff] %vm1116, %v1082
      %1148 = vst.msk [vmem:[%s175 + $0xf8] sm:$0xff] %vm1116, %v1083
      %1149 = vst.msk [vmem:[%s175 + $0x100] sm:$0xff] %vm1116, %v1084
      %1150 = vst.msk [vmem:[%s175 + $0x108] sm:$0xff] %vm1116, %v1085
      %1151 = vst.msk [vmem:[%s175 + $0x110] sm:$0xff] %vm1116, %v1086
      %1152 = vst.msk [vmem:[%s175 + $0x118] sm:$0xff] %vm1116, %v1087
      %1153 = vst.msk [vmem:[%s175 + $0x120] sm:$0xff] %vm1116, %v1088
      %1154 = vst.msk [vmem:[%s175 + $0x128] sm:$0xff] %vm1116, %v1089
      %1155 = vst.msk [vmem:[%s175 + $0x130] sm:$0xff] %vm1116, %v1090
      %1156 = vst.msk [vmem:[%s175 + $0x138] sm:$0xff] %vm1116, %v1091
      %1157 = vst.msk [vmem:[%s175 + $0x140] sm:$0xff] %vm1116, %v1092
      %1158 = vst.msk [vmem:[%s175 + $0x148] sm:$0xff] %vm1116, %v1093
      %1159 = vst.msk [vmem:[%s175 + $0x150] sm:$0xff] %vm1116, %v1094
      %1160 = vst.msk [vmem:[%s175 + $0x158] sm:$0xff] %vm1116, %v1095
      %1161 = vst.msk [vmem:[%s175 + $0x160] sm:$0xff] %vm1116, %v1096
      %1162 = vst.msk [vmem:[%s175 + $0x168] sm:$0xff] %vm1116, %v1097
      %1163 = vst.msk [vmem:[%s175 + $0x170] sm:$0xff] %vm1116, %v1098
      %1164 = vst.msk [vmem:[%s175 + $0x178] sm:$0xff] %vm1116, %v1099
      %1165 = vst.msk [vmem:[%s175 + $0x180] sm:$0xff] %vm1116, %v1100
      %1166 = vst.msk [vmem:[%s175 + $0x188] sm:$0xff] %vm1116, %v1101
      %1167 = vst.msk [vmem:[%s175 + $0x190] sm:$0xff] %vm1116, %v1102
      %1168 = vst.msk [vmem:[%s175 + $0x198] sm:$0xff] %vm1116, %v1103
      %1169 = vst.msk [vmem:[%s175 + $0x1a0] sm:$0xff] %vm1116, %v1104
      %1170 = vst.msk [vmem:[%s175 + $0x1a8] sm:$0xff] %vm1116, %v1105
      %1171 = vst.msk [vmem:[%s175 + $0x1b0] sm:$0xff] %vm1116, %v1106
      %1172 = vst.msk [vmem:[%s175 + $0x1b8] sm:$0xff] %vm1116, %v1107
      %1173 = vst.msk [vmem:[%s175 + $0x1c0] sm:$0xff] %vm1116, %v1108
      %1174 = vst.msk [vmem:[%s175 + $0x1c8] sm:$0xff] %vm1116, %v1109
      %1175 = vst.msk [vmem:[%s175 + $0x1d0] sm:$0xff] %vm1116, %v1110
      %1176 = vst.msk [vmem:[%s175 + $0x1d8] sm:$0xff] %vm1116, %v1111
      %1177 = vst.msk [vmem:[%s175 + $0x1e0] sm:$0xff] %vm1116, %v1112
      %1178 = vst.msk [vmem:[%s175 + $0x1e8] sm:$0xff] %vm1116, %v1113
      %1179 = vst.msk [vmem:[%s175 + $0x1f0] sm:$0xff] %vm1116, %v1114
      %1180 = vst.msk [vmem:[%s175 + $0x1f8] sm:$0xff] %vm1116, %v1115
      %s1181 = smul.u32 64, %s14
      %p1182 = scmp.lt.s32.totalorder %s1181, 127
      %s1183 = scalar_select %p1182, %s1181, 127
      %s1184 = smul.addr %s1183, 8
      %s1185 = scalar_lea.vmem %s3, %s1184
      // Predicated region
      $region33: #{tpu_custom_call.1} parent=31 // pred_check
        %p1186 = pneg %p100
      $region34: #{tpu_custom_call.1} parent=31 // pred_check_branch
        %1188 = sbr.rel (%p1186) target = $region36
      $region35: #{tpu_custom_call.1} parent=31 // pred_region
        %s1189 = smul.u32 64, %s14
      $region36: #{tpu_custom_call.1} parent=31 // pred_fallthru
        _
    $region32: #{tpu_custom_call.1} parent=5 // pred_fallthru
      _
    %p1190 = scmp.le.s32.totalorder 2, %s9
    // Predicated region
    $region37: #{tpu_custom_call.1} parent=5 // pred_check
      %p1191 = pneg %p1190
    $region38: #{tpu_custom_call.1} parent=5 // pred_check_branch
      %1193 = sbr.rel (%p1191) target = $region40
    $region39: #{tpu_custom_call.1} parent=5 // pred_region
      %s1194 = ssub.s32 %s9, 2
      // Predicated region
      $region41: #{tpu_custom_call.1} parent=39 // pred_check
        %p1195 = pneg %p106
      $region42: #{tpu_custom_call.1} parent=39 // pred_check_branch
        %1197 = sbr.rel (%p1195) target = $region44
      $region43: #{tpu_custom_call.1} parent=39 // pred_region
        %s1198 = smul.u32 64, %s15
        %p1199 = scmp.lt.s32.totalorder %s1198, 127
        %s1200 = scalar_select %p1199, %s1198, 127
        %s1201 = smul.addr %s1200, 8
        %s1202 = scalar_lea.vmem %s3, %s1201
      $region44: #{tpu_custom_call.1} parent=39 // pred_fallthru
        _
    $region40: #{tpu_custom_call.1} parent=5 // pred_fallthru
      _
  $region6: #{tpu_custom_call.1} parent=0 // loop_footer
    %s13 = sadd.s32 1, %s9
  $region7: #{tpu_custom_call.1} parent=0 // loop_footer_branch
    %8 = sbr.rel target = $region3
  $region8: #{tpu_custom_call.1} parent=0 // loop_exit
    _

</llo_original>
